<compile_context>
chip_gen: v5e
topology: v5e:2x2
jax: 0.10.0
libtpu: 0.0.40
codegen_flags: <defaults>
</compile_context>

<pallas_src>
import functools

import jax
import jax.numpy as jnp
import numpy as np
from jax.experimental import pallas as pl
from jax.experimental.pallas import tpu as pltpu


def _eikonal_kernel(h_ref, src_ref, f_ref, u_ref, *, Hl, Wl, max_iters, chunk):
    """Jacobi upwind eikonal solver on a single padded VMEM-resident tile."""
    Hp, Wp = f_ref.shape
    big = jnp.float32(1e10)
    zero = jnp.float32(0.0)

    h = h_ref[0]
    ix = src_ref[0]
    jx = src_ref[1]

    # ---- loop invariants (hoisted; JAX will not LICM these out of the loop) ----
    fh = f_ref[...] * h                       # f * h
    two_fh2 = 2.0 * fh * fh                   # 2 (f h)^2

    ii = jax.lax.broadcasted_iota(jnp.int32, (Hp, Wp), 0)
    jj = jax.lax.broadcasted_iota(jnp.int32, (Hp, Wp), 1)
    src = (ii == ix) & (jj == jx)             # point-source mask
    interior = (ii < Hl) & (jj < Wl)          # logical (unpadded) domain

    # Where a rolled neighbor crosses the logical domain edge the missing
    # neighbor is replaced by +inf (one-sided upwind stencil).  These masks
    # also isolate the logical domain from the padded region.
    top = ii == 0
    bot = ii == Hl - 1
    left = jj == 0
    right = jj == Wl - 1

    u0 = jnp.where(src, zero, big)

    def jacobi(u):
        # Neighbor shifts via XLU rotates (no VMEM temporaries / relayouts).
        u_im1 = jnp.where(top, big, pltpu.roll(u, shift=1, axis=0))         # u[i-1, j]
        u_ip1 = jnp.where(bot, big, pltpu.roll(u, shift=Hp - 1, axis=0))    # u[i+1, j]
        u_jm1 = jnp.where(left, big, pltpu.roll(u, shift=1, axis=1))        # u[i, j-1]
        u_jp1 = jnp.where(right, big, pltpu.roll(u, shift=Wp - 1, axis=1))  # u[i, j+1]

        a = jnp.minimum(u_im1, u_ip1)
        b = jnp.minimum(u_jm1, u_jp1)
        d = jnp.abs(a - b)

        # Godunov upwind local solver.
        ubar_1d = jnp.minimum(a, b) + fh
        disc = jnp.maximum(two_fh2 - d * d, zero)
        ubar_2d = 0.5 * ((a + b) + jnp.sqrt(disc))
        ubar = jnp.where(d >= fh, ubar_1d, ubar_2d)

        # Monotone non-increasing update.  No per-iteration source clamp
        # needed: f >= 0 => ubar >= 0 => min(0, ubar) keeps the source at 0.
        return jnp.minimum(u, ubar)

    max_chunks = max(1, (int(max_iters) + chunk - 1) // chunk)

    def cond_fn(state):
        k, _, delta = state
        return jnp.logical_and(k < max_chunks, delta > zero)

    def body_fn(state):
        k, u, _ = state
        u_new = u
        for _ in range(chunk):                # statically unrolled serial chain
            u_new = jacobi(u_new)
        # Exact convergence test: the iteration is monotone non-increasing, so
        # zero change on the logical domain over a whole chunk == fixed point.
        # (Padded cells cannot influence logical cells — masked to +inf above.)
        delta = jnp.max(jnp.where(interior, u - u_new, zero))
        return k + jnp.int32(1), u_new, delta

    _, u_final, _ = jax.lax.while_loop(cond_fn, body_fn,
                                       (jnp.int32(0), u0, big))

    u_ref[...] = jnp.where(src, zero, u_final)


def eikonal2d_forward(f, h, ix, jx, max_iters=None, chunk=8):
    """JAX wrapper: u = Eikonal2D(h, ix, jx)(f)."""
    H, W = f.shape
    if max_iters is None:
        # Generous safety cap; the in-kernel convergence check exits far
        # earlier (typically within ~1-2*(H+W) Jacobi passes).
        max_iters = 8 * (H + W)

    # Pad to an (8, 128)-aligned, lane-dense slab.  The padded region never
    # feeds back into the logical domain (boundary masks), and is sliced off.
    Hp = ((max(H, 8) + 7) // 8) * 8
    Wp = ((max(W, 128) + 127) // 128) * 128

    f_p = jnp.pad(jnp.asarray(f, dtype=jnp.float32),
                  ((0, Hp - H), (0, Wp - W)), constant_values=1.0)
    h_arr = jnp.asarray([h], dtype=jnp.float32)
    src_arr = jnp.asarray([ix, jx], dtype=jnp.int32)

    kernel = functools.partial(_eikonal_kernel, Hl=H, Wl=W,
                               max_iters=int(max_iters), chunk=int(chunk))

    # ~10 live full-size f32 tiles in the hot loop + headroom; keep the scoped
    # VMEM request within v7x's 64 MiB physical VMEM.
    tile_bytes = Hp * Wp * 4
    vmem_limit = int(min(64 * 1024 * 1024,
                         max(32 * 1024 * 1024, 24 * tile_bytes)))

    u_p = pl.pallas_call(
        kernel,
        out_shape=jax.ShapeDtypeStruct((Hp, Wp), jnp.float32),
        in_specs=[
            pl.BlockSpec(memory_space=pltpu.MemorySpace.SMEM),   # h scalar
            pl.BlockSpec(memory_space=pltpu.MemorySpace.SMEM),   # (ix, jx)
            pl.BlockSpec(memory_space=pltpu.MemorySpace.VMEM),   # f (padded)
        ],
        out_specs=pl.BlockSpec(memory_space=pltpu.MemorySpace.VMEM),
        compiler_params=pltpu.CompilerParams(vmem_limit_bytes=vmem_limit),
    )(h_arr, src_arr, f_p)
    return u_p[:H, :W]


class Eikonal2D:
    """Mirror of the PyTorch module (forward only).

    # TODO(synk): backward (adjoint fast-sweeping grad_f) not implemented;
    # only the forward pass is required here.
    """

    def __init__(self, h, ix, jx):
        self.h = float(h)
        self.ix = int(ix)
        self.jx = int(jx)

    def __call__(self, f):
        return eikonal2d_forward(f, self.h, self.ix, self.jx)


def _eikonal_fsm_reference(f, h, ix, jx, n_cycles=20):
    """Pure-numpy Gauss-Seidel fast sweeping reference (same fixed point)."""
    f = np.asarray(f, dtype=np.float64)
    m, n = f.shape
    u = np.full((m, n), 1e10, dtype=np.float64)
    u[ix, jx] = 0.0
    for _ in range(n_cycles):
        for sweep in range(4):
            ir = range(m) if sweep in (0, 1) else range(m - 1, -1, -1)
            jr = range(n) if sweep in (0, 2) else range(n - 1, -1, -1)
            for i in ir:
                for j in jr:
                    if i == ix and j == jx:
                        continue
                    if i == 0:
                        a = u[1, j]
                    elif i == m - 1:
                        a = u[m - 2, j]
                    else:
                        a = min(u[i - 1, j], u[i + 1, j])
                    if j == 0:
                        b = u[i, 1]
                    elif j == n - 1:
                        b = u[i, n - 2]
                    else:
                        b = min(u[i, j - 1], u[i, j + 1])
                    fh = f[i, j] * h
                    if abs(a - b) >= fh:
                        ubar = min(a, b) + fh
                    else:
                        ubar = 0.5 * (a + b + np.sqrt(2.0 * fh * fh - (a - b) ** 2))
                    u[i, j] = min(u[i, j], ubar)
    return u


def _check_case(H, W, h, ix, jx, key):
    # Slowness field f > 0 (e.g. 1/velocity), deterministic.
    f = 0.5 + jax.random.uniform(key, (H, W), dtype=jnp.float32)
    model = Eikonal2D(h, ix, jx)
    u = jax.block_until_ready(model(f))

    u_np = np.asarray(u)
    assert u_np.shape == (H, W) and u_np.dtype == np.float32
    assert np.isfinite(u_np).all()
    assert u_np[ix, jx] == 0.0
    assert (u_np >= 0.0).all()
    u_ref = _eikonal_fsm_reference(np.asarray(f), h, ix, jx)
    assert np.allclose(u_np, u_ref, rtol=1e-3, atol=1e-3), (
        float(np.abs(u_np - u_ref).max()))


if __name__ == "__main__":
    key = jax.random.PRNGKey(0)
    k1, k2 = jax.random.split(key)

    # Aligned small case (matches the original test size).
    _check_case(H=16, W=16, h=1.0, ix=3, jx=5, key=k1)
    # Non-aligned case: exercises padding + boundary masks.
    _check_case(H=13, W=20, h=0.7, ix=7, jx=2, key=k2)

    print("KERNEL_OK")
</pallas_src>

<mosaic_0001>
module attributes {stable_mosaic.version = 11 : i64} {
  func.func @_eikonal_kernel(%arg0: memref<1xf32, #tpu.memory_space<smem>>, %arg1: memref<2xi32, #tpu.memory_space<smem>>, %arg2: memref<16x128xf32, #tpu.memory_space<vmem>>, %arg3: memref<16x128xf32, #tpu.memory_space<vmem>>) attributes {dimension_semantics = [], scalar_prefetch = 0 : i64, scratch_operands = 0 : i64, tpu.core_type = #tpu.core_type<tc>} {
    %c0 = arith.constant 0 : index
    %0 = memref.load %arg0[%c0] : memref<1xf32, #tpu.memory_space<smem>>
    %c0_0 = arith.constant 0 : index
    %1 = memref.load %arg1[%c0_0] : memref<2xi32, #tpu.memory_space<smem>>
    %c1 = arith.constant 1 : index
    %2 = memref.load %arg1[%c1] : memref<2xi32, #tpu.memory_space<smem>>
    %c0_1 = arith.constant 0 : index
    %c0_2 = arith.constant 0 : index
    %3 = vector.load %arg2[%c0_1, %c0_2] : memref<16x128xf32, #tpu.memory_space<vmem>>, vector<16x128xf32>
    %4 = vector.broadcast %0 : f32 to vector<16x128xf32>
    %5 = arith.mulf %3, %4 : vector<16x128xf32>
    %cst = arith.constant 2.000000e+00 : f32
    %6 = vector.broadcast %cst : f32 to vector<16x128xf32>
    %7 = arith.mulf %6, %5 : vector<16x128xf32>
    %8 = arith.mulf %7, %5 : vector<16x128xf32>
    %9 = tpu.iota {dimensions = array<i32: 0>} : vector<16x128xi32>
    %10 = tpu.iota {dimensions = array<i32: 1>} : vector<16x128xi32>
    %11 = vector.broadcast %1 : i32 to vector<16x128xi32>
    %12 = arith.cmpi eq, %9, %11 : vector<16x128xi32>
    %13 = vector.broadcast %2 : i32 to vector<16x128xi32>
    %14 = arith.cmpi eq, %10, %13 : vector<16x128xi32>
    %15 = arith.andi %12, %14 : vector<16x128xi1>
    %c16_i32 = arith.constant 16 : i32
    %16 = vector.broadcast %c16_i32 : i32 to vector<16x128xi32>
    %17 = arith.cmpi slt, %9, %16 : vector<16x128xi32>
    %c16_i32_3 = arith.constant 16 : i32
    %18 = vector.broadcast %c16_i32_3 : i32 to vector<16x128xi32>
    %19 = arith.cmpi slt, %10, %18 : vector<16x128xi32>
    %20 = arith.andi %17, %19 : vector<16x128xi1>
    %c0_i32 = arith.constant 0 : i32
    %21 = vector.broadcast %c0_i32 : i32 to vector<16x128xi32>
    %22 = arith.cmpi eq, %9, %21 : vector<16x128xi32>
    %c15_i32 = arith.constant 15 : i32
    %23 = vector.broadcast %c15_i32 : i32 to vector<16x128xi32>
    %24 = arith.cmpi eq, %9, %23 : vector<16x128xi32>
    %c0_i32_4 = arith.constant 0 : i32
    %25 = vector.broadcast %c0_i32_4 : i32 to vector<16x128xi32>
    %26 = arith.cmpi eq, %10, %25 : vector<16x128xi32>
    %c15_i32_5 = arith.constant 15 : i32
    %27 = vector.broadcast %c15_i32_5 : i32 to vector<16x128xi32>
    %28 = arith.cmpi eq, %10, %27 : vector<16x128xi32>
    %cst_6 = arith.constant 0.000000e+00 : f32
    %cst_7 = arith.constant 1.000000e+10 : f32
    %29 = vector.broadcast %cst_6 : f32 to vector<16x128xf32>
    %30 = vector.broadcast %cst_7 : f32 to vector<16x128xf32>
    %31 = arith.select %15, %29, %30 : vector<16x128xi1>, vector<16x128xf32>
    %cst_8 = arith.constant 0.000000e+00 : f32
    %cst_9 = arith.constant 1.000000e+10 : f32
    %cst_10 = arith.constant 0.000000e+00 : f32
    %c0_i32_11 = arith.constant 0 : i32
    %cst_12 = arith.constant 1.000000e+10 : f32
    %32:3 = scf.while (%arg4 = %c0_i32_11, %arg5 = %31, %arg6 = %cst_12) : (i32, vector<16x128xf32>, f32) -> (i32, vector<16x128xf32>, f32) {
      %c32_i32 = arith.constant 32 : i32
      %36 = arith.cmpi slt, %arg4, %c32_i32 : i32
      %37 = arith.cmpf ogt, %arg6, %cst_8 : f32
      %38 = arith.andi %36, %37 : i1
      scf.condition(%38) %arg4, %arg5, %arg6 : i32, vector<16x128xf32>, f32
    } do {
    ^bb0(%arg4: i32, %arg5: vector<16x128xf32>, %arg6: f32):
      %c1_i32 = arith.constant 1 : i32
      %36 = tpu.dynamic_rotate %arg5 by %c1_i32 dim 0 : vector<16x128xf32>, i32 -> vector<16x128xf32>
      %37 = vector.broadcast %cst_9 : f32 to vector<16x128xf32>
      %38 = arith.select %22, %37, %36 : vector<16x128xi1>, vector<16x128xf32>
      %c15_i32_16 = arith.constant 15 : i32
      %39 = tpu.dynamic_rotate %arg5 by %c15_i32_16 dim 0 : vector<16x128xf32>, i32 -> vector<16x128xf32>
      %40 = vector.broadcast %cst_9 : f32 to vector<16x128xf32>
      %41 = arith.select %24, %40, %39 : vector<16x128xi1>, vector<16x128xf32>
      %c1_i32_17 = arith.constant 1 : i32
      %42 = tpu.dynamic_rotate %arg5 by %c1_i32_17 dim 1 : vector<16x128xf32>, i32 -> vector<16x128xf32>
      %43 = vector.broadcast %cst_9 : f32 to vector<16x128xf32>
      %44 = arith.select %26, %43, %42 : vector<16x128xi1>, vector<16x128xf32>
      %c127_i32 = arith.constant 127 : i32
      %45 = tpu.dynamic_rotate %arg5 by %c127_i32 dim 1 : vector<16x128xf32>, i32 -> vector<16x128xf32>
      %46 = vector.broadcast %cst_9 : f32 to vector<16x128xf32>
      %47 = arith.select %28, %46, %45 : vector<16x128xi1>, vector<16x128xf32>
      %48 = arith.minimumf %38, %41 : vector<16x128xf32>
      %49 = arith.minimumf %44, %47 : vector<16x128xf32>
      %50 = arith.subf %48, %49 : vector<16x128xf32>
      %51 = math.absf %50 : vector<16x128xf32>
      %52 = arith.minimumf %48, %49 : vector<16x128xf32>
      %53 = arith.addf %52, %5 : vector<16x128xf32>
      %54 = arith.mulf %51, %51 : vector<16x128xf32>
      %55 = arith.subf %8, %54 : vector<16x128xf32>
      %56 = vector.broadcast %cst_10 : f32 to vector<16x128xf32>
      %57 = arith.maximumf %55, %56 : vector<16x128xf32>
      %58 = arith.addf %48, %49 : vector<16x128xf32>
      %59 = math.sqrt %57 : vector<16x128xf32>
      %60 = arith.addf %58, %59 : vector<16x128xf32>
      %cst_18 = arith.constant 5.000000e-01 : f32
      %61 = vector.broadcast %cst_18 : f32 to vector<16x128xf32>
      %62 = arith.mulf %61, %60 : vector<16x128xf32>
      %63 = arith.cmpf oge, %51, %5 : vector<16x128xf32>
      %64 = arith.select %63, %53, %62 : vector<16x128xi1>, vector<16x128xf32>
      %65 = arith.minimumf %arg5, %64 : vector<16x128xf32>
      %c1_i32_19 = arith.constant 1 : i32
      %66 = tpu.dynamic_rotate %65 by %c1_i32_19 dim 0 : vector<16x128xf32>, i32 -> vector<16x128xf32>
      %67 = vector.broadcast %cst_9 : f32 to vector<16x128xf32>
      %68 = arith.select %22, %67, %66 : vector<16x128xi1>, vector<16x128xf32>
      %c15_i32_20 = arith.constant 15 : i32
      %69 = tpu.dynamic_rotate %65 by %c15_i32_20 dim 0 : vector<16x128xf32>, i32 -> vector<16x128xf32>
      %70 = vector.broadcast %cst_9 : f32 to vector<16x128xf32>
      %71 = arith.select %24, %70, %69 : vector<16x128xi1>, vector<16x128xf32>
      %c1_i32_21 = arith.constant 1 : i32
      %72 = tpu.dynamic_rotate %65 by %c1_i32_21 dim 1 : vector<16x128xf32>, i32 -> vector<16x128xf32>
      %73 = vector.broadcast %cst_9 : f32 to vector<16x128xf32>
      %74 = arith.select %26, %73, %72 : vector<16x128xi1>, vector<16x128xf32>
      %c127_i32_22 = arith.constant 127 : i32
      %75 = tpu.dynamic_rotate %65 by %c127_i32_22 dim 1 : vector<16x128xf32>, i32 -> vector<16x128xf32>
      %76 = vector.broadcast %cst_9 : f32 to vector<16x128xf32>
      %77 = arith.select %28, %76, %75 : vector<16x128xi1>, vector<16x128xf32>
      %78 = arith.minimumf %68, %71 : vector<16x128xf32>
      %79 = arith.minimumf %74, %77 : vector<16x128xf32>
      %80 = arith.subf %78, %79 : vector<16x128xf32>
      %81 = math.absf %80 : vector<16x128xf32>
      %82 = arith.minimumf %78, %79 : vector<16x128xf32>
      %83 = arith.addf %82, %5 : vector<16x128xf32>
      %84 = arith.mulf %81, %81 : vector<16x128xf32>
      %85 = arith.subf %8, %84 : vector<16x128xf32>
      %86 = vector.broadcast %cst_10 : f32 to vector<16x128xf32>
      %87 = arith.maximumf %85, %86 : vector<16x128xf32>
      %88 = arith.addf %78, %79 : vector<16x128xf32>
      %89 = math.sqrt %87 : vector<16x128xf32>
      %90 = arith.addf %88, %89 : vector<16x128xf32>
      %cst_23 = arith.constant 5.000000e-01 : f32
      %91 = vector.broadcast %cst_23 : f32 to vector<16x128xf32>
      %92 = arith.mulf %91, %90 : vector<16x128xf32>
      %93 = arith.cmpf oge, %81, %5 : vector<16x128xf32>
      %94 = arith.select %93, %83, %92 : vector<16x128xi1>, vector<16x128xf32>
      %95 = arith.minimumf %65, %94 : vector<16x128xf32>
      %c1_i32_24 = arith.constant 1 : i32
      %96 = tpu.dynamic_rotate %95 by %c1_i32_24 dim 0 : vector<16x128xf32>, i32 -> vector<16x128xf32>
      %97 = vector.broadcast %cst_9 : f32 to vector<16x128xf32>
      %98 = arith.select %22, %97, %96 : vector<16x128xi1>, vector<16x128xf32>
      %c15_i32_25 = arith.constant 15 : i32
      %99 = tpu.dynamic_rotate %95 by %c15_i32_25 dim 0 : vector<16x128xf32>, i32 -> vector<16x128xf32>
      %100 = vector.broadcast %cst_9 : f32 to vector<16x128xf32>
      %101 = arith.select %24, %100, %99 : vector<16x128xi1>, vector<16x128xf32>
      %c1_i32_26 = arith.constant 1 : i32
      %102 = tpu.dynamic_rotate %95 by %c1_i32_26 dim 1 : vector<16x128xf32>, i32 -> vector<16x128xf32>
      %103 = vector.broadcast %cst_9 : f32 to vector<16x128xf32>
      %104 = arith.select %26, %103, %102 : vector<16x128xi1>, vector<16x128xf32>
      %c127_i32_27 = arith.constant 127 : i32
      %105 = tpu.dynamic_rotate %95 by %c127_i32_27 dim 1 : vector<16x128xf32>, i32 -> vector<16x128xf32>
      %106 = vector.broadcast %cst_9 : f32 to vector<16x128xf32>
      %107 = arith.select %28, %106, %105 : vector<16x128xi1>, vector<16x128xf32>
      %108 = arith.minimumf %98, %101 : vector<16x128xf32>
      %109 = arith.minimumf %104, %107 : vector<16x128xf32>
      %110 = arith.subf %108, %109 : vector<16x128xf32>
      %111 = math.absf %110 : vector<16x128xf32>
      %112 = arith.minimumf %108, %109 : vector<16x128xf32>
      %113 = arith.addf %112, %5 : vector<16x128xf32>
      %114 = arith.mulf %111, %111 : vector<16x128xf32>
      %115 = arith.subf %8, %114 : vector<16x128xf32>
      %116 = vector.broadcast %cst_10 : f32 to vector<16x128xf32>
      %117 = arith.maximumf %115, %116 : vector<16x128xf32>
      %118 = arith.addf %108, %109 : vector<16x128xf32>
      %119 = math.sqrt %117 : vector<16x128xf32>
      %120 = arith.addf %118, %119 : vector<16x128xf32>
      %cst_28 = arith.constant 5.000000e-01 : f32
      %121 = vector.broadcast %cst_28 : f32 to vector<16x128xf32>
      %122 = arith.mulf %121, %120 : vector<16x128xf32>
      %123 = arith.cmpf oge, %111, %5 : vector<16x128xf32>
      %124 = arith.select %123, %113, %122 : vector<16x128xi1>, vector<16x128xf32>
      %125 = arith.minimumf %95, %124 : vector<16x128xf32>
      %c1_i32_29 = arith.constant 1 : i32
      %126 = tpu.dynamic_rotate %125 by %c1_i32_29 dim 0 : vector<16x128xf32>, i32 -> vector<16x128xf32>
      %127 = vector.broadcast %cst_9 : f32 to vector<16x128xf32>
      %128 = arith.select %22, %127, %126 : vector<16x128xi1>, vector<16x128xf32>
      %c15_i32_30 = arith.constant 15 : i32
      %129 = tpu.dynamic_rotate %125 by %c15_i32_30 dim 0 : vector<16x128xf32>, i32 -> vector<16x128xf32>
      %130 = vector.broadcast %cst_9 : f32 to vector<16x128xf32>
      %131 = arith.select %24, %130, %129 : vector<16x128xi1>, vector<16x128xf32>
      %c1_i32_31 = arith.constant 1 : i32
      %132 = tpu.dynamic_rotate %125 by %c1_i32_31 dim 1 : vector<16x128xf32>, i32 -> vector<16x128xf32>
      %133 = vector.broadcast %cst_9 : f32 to vector<16x128xf32>
      %134 = arith.select %26, %133, %132 : vector<16x128xi1>, vector<16x128xf32>
      %c127_i32_32 = arith.constant 127 : i32
      %135 = tpu.dynamic_rotate %125 by %c127_i32_32 dim 1 : vector<16x128xf32>, i32 -> vector<16x128xf32>
      %136 = vector.broadcast %cst_9 : f32 to vector<16x128xf32>
      %137 = arith.select %28, %136, %135 : vector<16x128xi1>, vector<16x128xf32>
      %138 = arith.minimumf %128, %131 : vector<16x128xf32>
      %139 = arith.minimumf %134, %137 : vector<16x128xf32>
      %140 = arith.subf %138, %139 : vector<16x128xf32>
      %141 = math.absf %140 : vector<16x128xf32>
      %142 = arith.minimumf %138, %139 : vector<16x128xf32>
      %143 = arith.addf %142, %5 : vector<16x128xf32>
      %144 = arith.mulf %141, %141 : vector<16x128xf32>
      %145 = arith.subf %8, %144 : vector<16x128xf32>
      %146 = vector.broadcast %cst_10 : f32 to vector<16x128xf32>
      %147 = arith.maximumf %145, %146 : vector<16x128xf32>
      %148 = arith.addf %138, %139 : vector<16x128xf32>
      %149 = math.sqrt %147 : vector<16x128xf32>
      %150 = arith.addf %148, %149 : vector<16x128xf32>
      %cst_33 = arith.constant 5.000000e-01 : f32
      %151 = vector.broadcast %cst_33 : f32 to vector<16x128xf32>
      %152 = arith.mulf %151, %150 : vector<16x128xf32>
      %153 = arith.cmpf oge, %141, %5 : vector<16x128xf32>
      %154 = arith.select %153, %143, %152 : vector<16x128xi1>, vector<16x128xf32>
      %155 = arith.minimumf %125, %154 : vector<16x128xf32>
      %c1_i32_34 = arith.constant 1 : i32
      %156 = tpu.dynamic_rotate %155 by %c1_i32_34 dim 0 : vector<16x128xf32>, i32 -> vector<16x128xf32>
      %157 = vector.broadcast %cst_9 : f32 to vector<16x128xf32>
      %158 = arith.select %22, %157, %156 : vector<16x128xi1>, vector<16x128xf32>
      %c15_i32_35 = arith.constant 15 : i32
      %159 = tpu.dynamic_rotate %155 by %c15_i32_35 dim 0 : vector<16x128xf32>, i32 -> vector<16x128xf32>
      %160 = vector.broadcast %cst_9 : f32 to vector<16x128xf32>
      %161 = arith.select %24, %160, %159 : vector<16x128xi1>, vector<16x128xf32>
      %c1_i32_36 = arith.constant 1 : i32
      %162 = tpu.dynamic_rotate %155 by %c1_i32_36 dim 1 : vector<16x128xf32>, i32 -> vector<16x128xf32>
      %163 = vector.broadcast %cst_9 : f32 to vector<16x128xf32>
      %164 = arith.select %26, %163, %162 : vector<16x128xi1>, vector<16x128xf32>
      %c127_i32_37 = arith.constant 127 : i32
      %165 = tpu.dynamic_rotate %155 by %c127_i32_37 dim 1 : vector<16x128xf32>, i32 -> vector<16x128xf32>
      %166 = vector.broadcast %cst_9 : f32 to vector<16x128xf32>
      %167 = arith.select %28, %166, %165 : vector<16x128xi1>, vector<16x128xf32>
      %168 = arith.minimumf %158, %161 : vector<16x128xf32>
      %169 = arith.minimumf %164, %167 : vector<16x128xf32>
      %170 = arith.subf %168, %169 : vector<16x128xf32>
      %171 = math.absf %170 : vector<16x128xf32>
      %172 = arith.minimumf %168, %169 : vector<16x128xf32>
      %173 = arith.addf %172, %5 : vector<16x128xf32>
      %174 = arith.mulf %171, %171 : vector<16x128xf32>
      %175 = arith.subf %8, %174 : vector<16x128xf32>
      %176 = vector.broadcast %cst_10 : f32 to vector<16x128xf32>
      %177 = arith.maximumf %175, %176 : vector<16x128xf32>
      %178 = arith.addf %168, %169 : vector<16x128xf32>
      %179 = math.sqrt %177 : vector<16x128xf32>
      %180 = arith.addf %178, %179 : vector<16x128xf32>
      %cst_38 = arith.constant 5.000000e-01 : f32
      %181 = vector.broadcast %cst_38 : f32 to vector<16x128xf32>
      %182 = arith.mulf %181, %180 : vector<16x128xf32>
      %183 = arith.cmpf oge, %171, %5 : vector<16x128xf32>
      %184 = arith.select %183, %173, %182 : vector<16x128xi1>, vector<16x128xf32>
      %185 = arith.minimumf %155, %184 : vector<16x128xf32>
      %c1_i32_39 = arith.constant 1 : i32
      %186 = tpu.dynamic_rotate %185 by %c1_i32_39 dim 0 : vector<16x128xf32>, i32 -> vector<16x128xf32>
      %187 = vector.broadcast %cst_9 : f32 to vector<16x128xf32>
      %188 = arith.select %22, %187, %186 : vector<16x128xi1>, vector<16x128xf32>
      %c15_i32_40 = arith.constant 15 : i32
      %189 = tpu.dynamic_rotate %185 by %c15_i32_40 dim 0 : vector<16x128xf32>, i32 -> vector<16x128xf32>
      %190 = vector.broadcast %cst_9 : f32 to vector<16x128xf32>
      %191 = arith.select %24, %190, %189 : vector<16x128xi1>, vector<16x128xf32>
      %c1_i32_41 = arith.constant 1 : i32
      %192 = tpu.dynamic_rotate %185 by %c1_i32_41 dim 1 : vector<16x128xf32>, i32 -> vector<16x128xf32>
      %193 = vector.broadcast %cst_9 : f32 to vector<16x128xf32>
      %194 = arith.select %26, %193, %192 : vector<16x128xi1>, vector<16x128xf32>
      %c127_i32_42 = arith.constant 127 : i32
      %195 = tpu.dynamic_rotate %185 by %c127_i32_42 dim 1 : vector<16x128xf32>, i32 -> vector<16x128xf32>
      %196 = vector.broadcast %cst_9 : f32 to vector<16x128xf32>
      %197 = arith.select %28, %196, %195 : vector<16x128xi1>, vector<16x128xf32>
      %198 = arith.minimumf %188, %191 : vector<16x128xf32>
      %199 = arith.minimumf %194, %197 : vector<16x128xf32>
      %200 = arith.subf %198, %199 : vector<16x128xf32>
      %201 = math.absf %200 : vector<16x128xf32>
      %202 = arith.minimumf %198, %199 : vector<16x128xf32>
      %203 = arith.addf %202, %5 : vector<16x128xf32>
      %204 = arith.mulf %201, %201 : vector<16x128xf32>
      %205 = arith.subf %8, %204 : vector<16x128xf32>
      %206 = vector.broadcast %cst_10 : f32 to vector<16x128xf32>
      %207 = arith.maximumf %205, %206 : vector<16x128xf32>
      %208 = arith.addf %198, %199 : vector<16x128xf32>
      %209 = math.sqrt %207 : vector<16x128xf32>
      %210 = arith.addf %208, %209 : vector<16x128xf32>
      %cst_43 = arith.constant 5.000000e-01 : f32
      %211 = vector.broadcast %cst_43 : f32 to vector<16x128xf32>
      %212 = arith.mulf %211, %210 : vector<16x128xf32>
      %213 = arith.cmpf oge, %201, %5 : vector<16x128xf32>
      %214 = arith.select %213, %203, %212 : vector<16x128xi1>, vector<16x128xf32>
      %215 = arith.minimumf %185, %214 : vector<16x128xf32>
      %c1_i32_44 = arith.constant 1 : i32
      %216 = tpu.dynamic_rotate %215 by %c1_i32_44 dim 0 : vector<16x128xf32>, i32 -> vector<16x128xf32>
      %217 = vector.broadcast %cst_9 : f32 to vector<16x128xf32>
      %218 = arith.select %22, %217, %216 : vector<16x128xi1>, vector<16x128xf32>
      %c15_i32_45 = arith.constant 15 : i32
      %219 = tpu.dynamic_rotate %215 by %c15_i32_45 dim 0 : vector<16x128xf32>, i32 -> vector<16x128xf32>
      %220 = vector.broadcast %cst_9 : f32 to vector<16x128xf32>
      %221 = arith.select %24, %220, %219 : vector<16x128xi1>, vector<16x128xf32>
      %c1_i32_46 = arith.constant 1 : i32
      %222 = tpu.dynamic_rotate %215 by %c1_i32_46 dim 1 : vector<16x128xf32>, i32 -> vector<16x128xf32>
      %223 = vector.broadcast %cst_9 : f32 to vector<16x128xf32>
      %224 = arith.select %26, %223, %222 : vector<16x128xi1>, vector<16x128xf32>
      %c127_i32_47 = arith.constant 127 : i32
      %225 = tpu.dynamic_rotate %215 by %c127_i32_47 dim 1 : vector<16x128xf32>, i32 -> vector<16x128xf32>
      %226 = vector.broadcast %cst_9 : f32 to vector<16x128xf32>
      %227 = arith.select %28, %226, %225 : vector<16x128xi1>, vector<16x128xf32>
      %228 = arith.minimumf %218, %221 : vector<16x128xf32>
      %229 = arith.minimumf %224, %227 : vector<16x128xf32>
      %230 = arith.subf %228, %229 : vector<16x128xf32>
      %231 = math.absf %230 : vector<16x128xf32>
      %232 = arith.minimumf %228, %229 : vector<16x128xf32>
      %233 = arith.addf %232, %5 : vector<16x128xf32>
      %234 = arith.mulf %231, %231 : vector<16x128xf32>
      %235 = arith.subf %8, %234 : vector<16x128xf32>
      %236 = vector.broadcast %cst_10 : f32 to vector<16x128xf32>
      %237 = arith.maximumf %235, %236 : vector<16x128xf32>
      %238 = arith.addf %228, %229 : vector<16x128xf32>
      %239 = math.sqrt %237 : vector<16x128xf32>
      %240 = arith.addf %238, %239 : vector<16x128xf32>
      %cst_48 = arith.constant 5.000000e-01 : f32
      %241 = vector.broadcast %cst_48 : f32 to vector<16x128xf32>
      %242 = arith.mulf %241, %240 : vector<16x128xf32>
      %243 = arith.cmpf oge, %231, %5 : vector<16x128xf32>
      %244 = arith.select %243, %233, %242 : vector<16x128xi1>, vector<16x128xf32>
      %245 = arith.minimumf %215, %244 : vector<16x128xf32>
      %c1_i32_49 = arith.constant 1 : i32
      %246 = tpu.dynamic_rotate %245 by %c1_i32_49 dim 0 : vector<16x128xf32>, i32 -> vector<16x128xf32>
      %247 = vector.broadcast %cst_9 : f32 to vector<16x128xf32>
      %248 = arith.select %22, %247, %246 : vector<16x128xi1>, vector<16x128xf32>
      %c15_i32_50 = arith.constant 15 : i32
      %249 = tpu.dynamic_rotate %245 by %c15_i32_50 dim 0 : vector<16x128xf32>, i32 -> vector<16x128xf32>
      %250 = vector.broadcast %cst_9 : f32 to vector<16x128xf32>
      %251 = arith.select %24, %250, %249 : vector<16x128xi1>, vector<16x128xf32>
      %c1_i32_51 = arith.constant 1 : i32
      %252 = tpu.dynamic_rotate %245 by %c1_i32_51 dim 1 : vector<16x128xf32>, i32 -> vector<16x128xf32>
      %253 = vector.broadcast %cst_9 : f32 to vector<16x128xf32>
      %254 = arith.select %26, %253, %252 : vector<16x128xi1>, vector<16x128xf32>
      %c127_i32_52 = arith.constant 127 : i32
      %255 = tpu.dynamic_rotate %245 by %c127_i32_52 dim 1 : vector<16x128xf32>, i32 -> vector<16x128xf32>
      %256 = vector.broadcast %cst_9 : f32 to vector<16x128xf32>
      %257 = arith.select %28, %256, %255 : vector<16x128xi1>, vector<16x128xf32>
      %258 = arith.minimumf %248, %251 : vector<16x128xf32>
      %259 = arith.minimumf %254, %257 : vector<16x128xf32>
      %260 = arith.subf %258, %259 : vector<16x128xf32>
      %261 = math.absf %260 : vector<16x128xf32>
      %262 = arith.minimumf %258, %259 : vector<16x128xf32>
      %263 = arith.addf %262, %5 : vector<16x128xf32>
      %264 = arith.mulf %261, %261 : vector<16x128xf32>
      %265 = arith.subf %8, %264 : vector<16x128xf32>
      %266 = vector.broadcast %cst_10 : f32 to vector<16x128xf32>
      %267 = arith.maximumf %265, %266 : vector<16x128xf32>
      %268 = arith.addf %258, %259 : vector<16x128xf32>
      %269 = math.sqrt %267 : vector<16x128xf32>
      %270 = arith.addf %268, %269 : vector<16x128xf32>
      %cst_53 = arith.constant 5.000000e-01 : f32
      %271 = vector.broadcast %cst_53 : f32 to vector<16x128xf32>
      %272 = arith.mulf %271, %270 : vector<16x128xf32>
      %273 = arith.cmpf oge, %261, %5 : vector<16x128xf32>
      %274 = arith.select %273, %263, %272 : vector<16x128xi1>, vector<16x128xf32>
      %275 = arith.minimumf %245, %274 : vector<16x128xf32>
      %276 = arith.subf %arg5, %275 : vector<16x128xf32>
      %277 = vector.broadcast %cst_10 : f32 to vector<16x128xf32>
      %278 = arith.select %20, %276, %277 : vector<16x128xi1>, vector<16x128xf32>
      %279 = vector.shape_cast %278 : vector<16x128xf32> to vector<1x16x128xf32>
      %cst_54 = arith.constant dense<0xFF800000> : vector<1xf32>
      %280 = vector.multi_reduction <maximumf>, %279, %cst_54 [1, 2] : vector<1x16x128xf32> to vector<1xf32>
      %281 = vector.shape_cast %280 : vector<1xf32> to vector<1x1x1xf32>
      %282 = vector.extract %281[0, 0, 0] : f32 from vector<1x1x1xf32>
      %c1_i32_55 = arith.constant 1 : i32
      %283 = arith.addi %arg4, %c1_i32_55 : i32
      scf.yield %283, %275, %282 : i32, vector<16x128xf32>, f32
    }
    %cst_13 = arith.constant 0.000000e+00 : f32
    %33 = vector.broadcast %cst_13 : f32 to vector<16x128xf32>
    %34 = arith.select %15, %33, %32#1 : vector<16x128xi1>, vector<16x128xf32>
    %c0_14 = arith.constant 0 : index
    %c0_15 = arith.constant 0 : index
    %35 = vector.load %arg3[%c0_14, %c0_15] : memref<16x128xf32, #tpu.memory_space<vmem>>, vector<16x128xf32>
    tpu.vector_store %arg3[%c0_14, %c0_15], %34 {strides = array<i32>} : memref<16x128xf32, #tpu.memory_space<vmem>>, vector<16x128xf32>,
    return
  }
}

</mosaic_0001>

<llo_original>
// kernel: tpu_custom_call.1
$region0: #{tpu_custom_call.1}
  #allocation0 [shape = 'u32[]', space=smem, size = 0x4, offset = 0x4, fixed_abs, tag = 'smem constant byte address 0x4 - core index']
  #allocation1 [shape = 'u32[72,128]{1,0:T(1,128)}', space=vmem, size = 0x9000, scoped, tag = 'internal scratch']
  #allocation2 [shape = 'f32[1]{0:T(128)S(6)}', space=smem, size = 0x200, scoped, tag = 'scoped memory for tpu_custom_call.1']
  %s0 = inlined_call_operand.<no memory space> [shape: f32[1], index: 0, kind: input, shape index: {}]
  %s1 = inlined_call_operand.vmem [shape: s32[2], index: 1, kind: input, shape index: {}]
  %s2 = inlined_call_operand.hbm [shape: f32[16,128], index: 2, kind: input, shape index: {}]
  %s3 = inlined_call_operand.hbm [shape: f32[16,128], index: 3, kind: output, shape index: {}]
  %s4 = sld [smem:[#allocation0]]
  $region37: #{tpu_custom_call.1} parent=0
    _
  %s6 = ssub.s32 1, %s4
  %s7 = scalar_select 0, %s6, %s4
  %8 = sst [smem:[#allocation2]] %s0
  $region1: #{tpu_custom_call.1} parent=0
    #allocation3 [shape = 'u8[512]{0}', space=smem, size = 0x200, scoped, tag = 'input window, operand 1, single buffered']
    #allocation4 [shape = 's32[1]{0}', space=sflag, size = 0x4, scoped, tag = 'scoped memory for tpu_custom_call.1']
    #allocation5 [shape = 's32[1]{0}', space=sflag, size = 0x4, scoped, tag = 'scoped memory for tpu_custom_call.1']
    #allocation6 [shape = 's32[1]{0}', space=sflag, size = 0x4, scoped, tag = 'scoped memory for tpu_custom_call.1']
    #allocation7 [shape = 'u8[8192]{0}', space=vmem, size = 0x2000, scoped, tag = 'input window, operand 2, single buffered']
    #allocation8 [shape = 'u8[8192]{0}', space=vmem, size = 0x2000, scoped, tag = 'output window, operand 0, single buffered']
    %9 = vsyncpa [#allocation6], 0
    %10 = vsyncpa [#allocation4], 0
    %11 = vsyncpa [#allocation5], 0
    // Predicated region
    $region2: #{tpu_custom_call.1} parent=1 // pred_check
      _
    $region3: #{tpu_custom_call.1} parent=1 // pred_check_branch
      %13 = sbr.rel (0) target = $region5
    $region4: #{tpu_custom_call.1} parent=1 // pred_region
      _
    $region5: #{tpu_custom_call.1} parent=1 // pred_fallthru
      _
    // Predicated region
    $region6: #{tpu_custom_call.1} parent=1 // pred_check
      _
    $region7: #{tpu_custom_call.1} parent=1 // pred_check_branch
      %15 = sbr.rel (0) target = $region9
    $region8: #{tpu_custom_call.1} parent=1 // pred_region
      %17 = vsyncadd [#allocation6], 0
      %s19 = sshll.u32 %s1, 4
      %s20 = int_to_ptr.vmem [resolvable:$true] %s19
      %22 = dma.vmem_to_smem %s20, 16, [#allocation3], [#allocation6]
    $region9: #{tpu_custom_call.1} parent=1 // pred_fallthru
      _
    // Predicated region
    $region10: #{tpu_custom_call.1} parent=1 // pred_check
      _
    $region11: #{tpu_custom_call.1} parent=1 // pred_check_branch
      %24 = sbr.rel (0) target = $region13
    $region12: #{tpu_custom_call.1} parent=1 // pred_region
      %26 = vsyncadd [#allocation4], 0
      %s27 = sshll.u32 %s2, 4
      %s28 = int_to_ptr.hbm [resolvable:$true] %s27
      %s29 = sshll.u32 [#allocation7], 4
      %s30 = int_to_ptr.vmem [resolvable:$true] %s29
      %35 = dma.hbm_to_vmem [thread:$0]  %s28, 256, %s30, [#allocation4], 128, 128, 8
    $region13: #{tpu_custom_call.1} parent=1 // pred_fallthru
      _
    // Predicated region
    $region14: #{tpu_custom_call.1} parent=1 // pred_check
      _
    $region15: #{tpu_custom_call.1} parent=1 // pred_check_branch
      %37 = sbr.rel (0) target = $region17
    $region16: #{tpu_custom_call.1} parent=1 // pred_region
      %39 = dma.done [#allocation6], 16
    $region17: #{tpu_custom_call.1} parent=1 // pred_fallthru
      _
    // Predicated region
    $region18: #{tpu_custom_call.1} parent=1 // pred_check
      _
    $region19: #{tpu_custom_call.1} parent=1 // pred_check_branch
      %41 = sbr.rel (0) target = $region21
    $region20: #{tpu_custom_call.1} parent=1 // pred_region
      %43 = dma.done [#allocation4], 256
    $region21: #{tpu_custom_call.1} parent=1 // pred_fallthru
      _
    %44 = sfence
    %s45 = sld [smem:[#allocation2]]
    %s46 = sld [smem:[#allocation3]]
    %s47 = sld [smem:[#allocation3 + $0x1]]
    %v48 = vld [vmem:[#allocation7] sm:$0xff]
    %v49 = vld [vmem:[#allocation7 + $0x8] sm:$0xff]
    %v50 = vstv %s45
    %v51 = vmul.f32 %v48, %v50
    %v52 = vmul.f32 %v49, %v50
    %v53 = vmul.f32 %v51, 2.0
    %v54 = vmul.f32 %v52, 2.0
    %v55 = vmul.f32 %v53, %v51
    %v56 = vmul.f32 %v54, %v52
    %v57 = vlaneseq
    %v58 = vshrl.u32 %v57, 7
    %v59 = vadd.s32 %v58, 8
    %v60 = vlaneseq
    %v61 = vand.u32 %v60, 127
    %v62 = vstv %s46
    %vm63 = vcmp.eq.s32.totalorder %v58, %v62
    %vm64 = vcmp.eq.s32.totalorder %v59, %v62
    %v65 = vstv %s47
    %vm66 = vcmp.eq.s32.totalorder %v61, %v65
    %vm67 = vmand %vm63, %vm66
    %vm68 = vmand %vm64, %vm66
    %vm69 = vcmp.lt.s32.totalorder %v58, 16
    %vm70 = vcmp.lt.s32.totalorder %v59, 16
    %vm71 = vcmp.lt.s32.totalorder %v61, 16
    %vm72 = vmand %vm69, %vm71
    %vm73 = vmand %vm70, %vm71
    %vm74 = vcmp.eq.s32.totalorder %v58, 0
    %vm75 = vcmp.eq.s32.totalorder %v59, 0
    %vm76 = vcmp.eq.s32.totalorder %v58, 15
    %vm77 = vcmp.eq.s32.totalorder %v59, 15
    %vm78 = vcmp.eq.s32.totalorder %v61, 0
    %vm79 = vcmp.eq.s32.totalorder %v61, 15
    %v80 = vsel %vm67, 0.0, 1e+10
    %v81 = vsel %vm68, 0.0, 1e+10
    // While loop
    $region22: #{tpu_custom_call.1} parent=1 // loop_pre_header
      _
    $region23: #{tpu_custom_call.1} parent=1 // loop_header
      %s83 = sphi 0, %s733
      %v84 = vphi %v80, %v717
      %v85 = vphi %v81, %v718
      %s86 = sphi 1e+10, %s732
      %p87 = scmp.lt.s32.totalorder %s83, 32
      %p88 = scmp.gt.f32.partialorder %s86, 0.0
      %p89 = pnand %p87, %p88
      %p90 = pneg %p89
    $region24: #{tpu_custom_call.1} parent=1 // loop_header_branch
      %92 = sbr.rel (%p89) target = $region28
    $region25: #{tpu_custom_call.1} parent=1 // loop_body
      %v93 = vrot.slane %v84, 7
      %v94 = vrot.slane %v85, 7
      %vm95 = vcmp.lt.s32.totalorder %v58, 1
      %v96 = vsel %vm95, %v93, %v94
      %v97 = vsel %vm95, %v94, %v93
      %v98 = vsel %vm74, 1e+10, %v97
      %v99 = vsel %vm75, 1e+10, %v96
      %v100 = vrot.slane %v84, 1
      %v101 = vrot.slane %v85, 1
      %vm102 = vcmp.lt.s32.totalorder %v58, 7
      %v103 = vsel %vm102, %v100, %v101
      %v104 = vsel %vm102, %v101, %v100
      %v105 = vsel %vm76, 1e+10, %v103
      %v106 = vsel %vm77, 1e+10, %v104
      %107 = vrot.lane.b32.xlu0 %v84, 1
      %v108 = vpop.permute.xlu0 %107
      %109 = vrot.lane.b32.xlu0 %v85, 1
      %v110 = vpop.permute.xlu0 %109
      %v111 = vsel %vm78, 1e+10, %v108
      %v112 = vsel %vm78, 1e+10, %v110
      %113 = vrot.lane.b32.xlu0 %v84, 127
      %v114 = vpop.permute.xlu0 %113
      %115 = vrot.lane.b32.xlu0 %v85, 127
      %v116 = vpop.permute.xlu0 %115
      %v117 = vsel %vm79, 1e+10, %v114
      %v118 = vsel %vm79, 1e+10, %v116
      %v119 = vmin.f32 %v98, %v105
      %v120 = vmin.f32 %v99, %v106
      %v121 = vmin.f32 %v111, %v117
      %v122 = vmin.f32 %v112, %v118
      %v123 = vsub.f32 %v119, %v121
      %v124 = vsub.f32 %v120, %v122
      %v125 = vand.u32 2147483647, %v123
      %v126 = vand.u32 2147483647, %v124
      %v127 = vmin.f32 %v119, %v121
      %v128 = vmin.f32 %v120, %v122
      %v129 = vadd.f32 %v127, %v51
      %v130 = vadd.f32 %v128, %v52
      %v131 = vmul.f32 %v125, %v125
      %v132 = vmul.f32 %v126, %v126
      %v133 = vsub.f32 %v55, %v131
      %v134 = vsub.f32 %v56, %v132
      %v135 = vmax.f32 %v133, 0.0
      %v136 = vmax.f32 %v134, 0.0
      %v137 = vadd.f32 %v119, %v121
      %v138 = vadd.f32 %v120, %v122
      %v139 = vrsqrt.pop %v135
      %v140 = vmul.f32 %v139, %v135
      %v141 = vmul.f32 %v140, %v139
      %v142 = vmul.f32 0.5, %v141
      %v143 = vsub.f32 1.5, %v142
      %v144 = vmul.f32 %v139, %v143
      %v145 = vmul.f32 %v135, %v144
      %vm146 = vcmp.eq.f32.partialorder %v135, inf
      %v147 = vsel %vm146, %v135, %v145
      %vm148 = vcmp.eq.f32.partialorder %v135, 0.0
      %v149 = vand.u32 %v135, 2147483648
      %v150 = vsel %vm148, %v149, %v147
      %v151 = vrsqrt.pop %v136
      %v152 = vmul.f32 %v151, %v136
      %v153 = vmul.f32 %v152, %v151
      %v154 = vmul.f32 0.5, %v153
      %v155 = vsub.f32 1.5, %v154
      %v156 = vmul.f32 %v151, %v155
      %v157 = vmul.f32 %v136, %v156
      %vm158 = vcmp.eq.f32.partialorder %v136, inf
      %v159 = vsel %vm158, %v136, %v157
      %vm160 = vcmp.eq.f32.partialorder %v136, 0.0
      %v161 = vand.u32 %v136, 2147483648
      %v162 = vsel %vm160, %v161, %v159
      %v163 = vadd.f32 %v137, %v150
      %v164 = vadd.f32 %v138, %v162
      %v165 = vmul.f32 %v163, 0.5
      %v166 = vmul.f32 %v164, 0.5
      %vm167 = vcmp.ge.f32.partialorder %v125, %v51
      %vm168 = vcmp.ge.f32.partialorder %v126, %v52
      %v169 = vsel %vm167, %v129, %v165
      %v170 = vsel %vm168, %v130, %v166
      %v171 = vmin.f32 %v84, %v169
      %v172 = vmin.f32 %v85, %v170
      %v173 = vrot.slane %v171, 7
      %v174 = vrot.slane %v172, 7
      %v175 = vsel %vm95, %v173, %v174
      %v176 = vsel %vm95, %v174, %v173
      %v177 = vsel %vm74, 1e+10, %v176
      %v178 = vsel %vm75, 1e+10, %v175
      %v179 = vrot.slane %v171, 1
      %v180 = vrot.slane %v172, 1
      %v181 = vsel %vm102, %v179, %v180
      %v182 = vsel %vm102, %v180, %v179
      %v183 = vsel %vm76, 1e+10, %v181
      %v184 = vsel %vm77, 1e+10, %v182
      %185 = vrot.lane.b32.xlu0 %v171, 1
      %v186 = vpop.permute.xlu0 %185
      %187 = vrot.lane.b32.xlu0 %v172, 1
      %v188 = vpop.permute.xlu0 %187
      %v189 = vsel %vm78, 1e+10, %v186
      %v190 = vsel %vm78, 1e+10, %v188
      %191 = vrot.lane.b32.xlu0 %v171, 127
      %v192 = vpop.permute.xlu0 %191
      %193 = vrot.lane.b32.xlu0 %v172, 127
      %v194 = vpop.permute.xlu0 %193
      %v195 = vsel %vm79, 1e+10, %v192
      %v196 = vsel %vm79, 1e+10, %v194
      %v197 = vmin.f32 %v177, %v183
      %v198 = vmin.f32 %v178, %v184
      %v199 = vmin.f32 %v189, %v195
      %v200 = vmin.f32 %v190, %v196
      %v201 = vsub.f32 %v197, %v199
      %v202 = vsub.f32 %v198, %v200
      %v203 = vand.u32 2147483647, %v201
      %v204 = vand.u32 2147483647, %v202
      %v205 = vmin.f32 %v197, %v199
      %v206 = vmin.f32 %v198, %v200
      %v207 = vadd.f32 %v205, %v51
      %v208 = vadd.f32 %v206, %v52
      %v209 = vmul.f32 %v203, %v203
      %v210 = vmul.f32 %v204, %v204
      %v211 = vsub.f32 %v55, %v209
      %v212 = vsub.f32 %v56, %v210
      %v213 = vmax.f32 %v211, 0.0
      %v214 = vmax.f32 %v212, 0.0
      %v215 = vadd.f32 %v197, %v199
      %v216 = vadd.f32 %v198, %v200
      %v217 = vrsqrt.pop %v213
      %v218 = vmul.f32 %v217, %v213
      %v219 = vmul.f32 %v218, %v217
      %v220 = vmul.f32 0.5, %v219
      %v221 = vsub.f32 1.5, %v220
      %v222 = vmul.f32 %v217, %v221
      %v223 = vmul.f32 %v213, %v222
      %vm224 = vcmp.eq.f32.partialorder %v213, inf
      %v225 = vsel %vm224, %v213, %v223
      %vm226 = vcmp.eq.f32.partialorder %v213, 0.0
      %v227 = vand.u32 %v213, 2147483648
      %v228 = vsel %vm226, %v227, %v225
      %v229 = vrsqrt.pop %v214
      %v230 = vmul.f32 %v229, %v214
      %v231 = vmul.f32 %v230, %v229
      %v232 = vmul.f32 0.5, %v231
      %v233 = vsub.f32 1.5, %v232
      %v234 = vmul.f32 %v229, %v233
      %v235 = vmul.f32 %v214, %v234
      %vm236 = vcmp.eq.f32.partialorder %v214, inf
      %v237 = vsel %vm236, %v214, %v235
      %vm238 = vcmp.eq.f32.partialorder %v214, 0.0
      %v239 = vand.u32 %v214, 2147483648
      %v240 = vsel %vm238, %v239, %v237
      %v241 = vadd.f32 %v215, %v228
      %v242 = vadd.f32 %v216, %v240
      %v243 = vmul.f32 %v241, 0.5
      %v244 = vmul.f32 %v242, 0.5
      %vm245 = vcmp.ge.f32.partialorder %v203, %v51
      %vm246 = vcmp.ge.f32.partialorder %v204, %v52
      %v247 = vsel %vm245, %v207, %v243
      %v248 = vsel %vm246, %v208, %v244
      %v249 = vmin.f32 %v171, %v247
      %v250 = vmin.f32 %v172, %v248
      %v251 = vrot.slane %v249, 7
      %v252 = vrot.slane %v250, 7
      %v253 = vsel %vm95, %v251, %v252
      %v254 = vsel %vm95, %v252, %v251
      %v255 = vsel %vm74, 1e+10, %v254
      %v256 = vsel %vm75, 1e+10, %v253
      %v257 = vrot.slane %v249, 1
      %v258 = vrot.slane %v250, 1
      %v259 = vsel %vm102, %v257, %v258
      %v260 = vsel %vm102, %v258, %v257
      %v261 = vsel %vm76, 1e+10, %v259
      %v262 = vsel %vm77, 1e+10, %v260
      %263 = vrot.lane.b32.xlu0 %v249, 1
      %v264 = vpop.permute.xlu0 %263
      %265 = vrot.lane.b32.xlu0 %v250, 1
      %v266 = vpop.permute.xlu0 %265
      %v267 = vsel %vm78, 1e+10, %v264
      %v268 = vsel %vm78, 1e+10, %v266
      %269 = vrot.lane.b32.xlu0 %v249, 127
      %v270 = vpop.permute.xlu0 %269
      %271 = vrot.lane.b32.xlu0 %v250, 127
      %v272 = vpop.permute.xlu0 %271
      %v273 = vsel %vm79, 1e+10, %v270
      %v274 = vsel %vm79, 1e+10, %v272
      %v275 = vmin.f32 %v255, %v261
      %v276 = vmin.f32 %v256, %v262
      %v277 = vmin.f32 %v267, %v273
      %v278 = vmin.f32 %v268, %v274
      %v279 = vsub.f32 %v275, %v277
      %v280 = vsub.f32 %v276, %v278
      %v281 = vand.u32 2147483647, %v279
      %v282 = vand.u32 2147483647, %v280
      %v283 = vmin.f32 %v275, %v277
      %v284 = vmin.f32 %v276, %v278
      %v285 = vadd.f32 %v283, %v51
      %v286 = vadd.f32 %v284, %v52
      %v287 = vmul.f32 %v281, %v281
      %v288 = vmul.f32 %v282, %v282
      %v289 = vsub.f32 %v55, %v287
      %v290 = vsub.f32 %v56, %v288
      %v291 = vmax.f32 %v289, 0.0
      %v292 = vmax.f32 %v290, 0.0
      %v293 = vadd.f32 %v275, %v277
      %v294 = vadd.f32 %v276, %v278
      %v295 = vrsqrt.pop %v291
      %v296 = vmul.f32 %v295, %v291
      %v297 = vmul.f32 %v296, %v295
      %v298 = vmul.f32 0.5, %v297
      %v299 = vsub.f32 1.5, %v298
      %v300 = vmul.f32 %v295, %v299
      %v301 = vmul.f32 %v291, %v300
      %vm302 = vcmp.eq.f32.partialorder %v291, inf
      %v303 = vsel %vm302, %v291, %v301
      %vm304 = vcmp.eq.f32.partialorder %v291, 0.0
      %v305 = vand.u32 %v291, 2147483648
      %v306 = vsel %vm304, %v305, %v303
      %v307 = vrsqrt.pop %v292
      %v308 = vmul.f32 %v307, %v292
      %v309 = vmul.f32 %v308, %v307
      %v310 = vmul.f32 0.5, %v309
      %v311 = vsub.f32 1.5, %v310
      %v312 = vmul.f32 %v307, %v311
      %v313 = vmul.f32 %v292, %v312
      %vm314 = vcmp.eq.f32.partialorder %v292, inf
      %v315 = vsel %vm314, %v292, %v313
      %vm316 = vcmp.eq.f32.partialorder %v292, 0.0
      %v317 = vand.u32 %v292, 2147483648
      %v318 = vsel %vm316, %v317, %v315
      %v319 = vadd.f32 %v293, %v306
      %v320 = vadd.f32 %v294, %v318
      %v321 = vmul.f32 %v319, 0.5
      %v322 = vmul.f32 %v320, 0.5
      %vm323 = vcmp.ge.f32.partialorder %v281, %v51
      %vm324 = vcmp.ge.f32.partialorder %v282, %v52
      %v325 = vsel %vm323, %v285, %v321
      %v326 = vsel %vm324, %v286, %v322
      %v327 = vmin.f32 %v249, %v325
      %v328 = vmin.f32 %v250, %v326
      %v329 = vrot.slane %v327, 7
      %v330 = vrot.slane %v328, 7
      %v331 = vsel %vm95, %v329, %v330
      %v332 = vsel %vm95, %v330, %v329
      %v333 = vsel %vm74, 1e+10, %v332
      %v334 = vsel %vm75, 1e+10, %v331
      %v335 = vrot.slane %v327, 1
      %v336 = vrot.slane %v328, 1
      %v337 = vsel %vm102, %v335, %v336
      %v338 = vsel %vm102, %v336, %v335
      %v339 = vsel %vm76, 1e+10, %v337
      %v340 = vsel %vm77, 1e+10, %v338
      %341 = vrot.lane.b32.xlu0 %v327, 1
      %v342 = vpop.permute.xlu0 %341
      %343 = vrot.lane.b32.xlu0 %v328, 1
      %v344 = vpop.permute.xlu0 %343
      %v345 = vsel %vm78, 1e+10, %v342
      %v346 = vsel %vm78, 1e+10, %v344
      %347 = vrot.lane.b32.xlu0 %v327, 127
      %v348 = vpop.permute.xlu0 %347
      %349 = vrot.lane.b32.xlu0 %v328, 127
      %v350 = vpop.permute.xlu0 %349
      %v351 = vsel %vm79, 1e+10, %v348
      %v352 = vsel %vm79, 1e+10, %v350
      %v353 = vmin.f32 %v333, %v339
      %v354 = vmin.f32 %v334, %v340
      %v355 = vmin.f32 %v345, %v351
      %v356 = vmin.f32 %v346, %v352
      %v357 = vsub.f32 %v353, %v355
      %v358 = vsub.f32 %v354, %v356
      %v359 = vand.u32 2147483647, %v357
      %v360 = vand.u32 2147483647, %v358
      %v361 = vmin.f32 %v353, %v355
      %v362 = vmin.f32 %v354, %v356
      %v363 = vadd.f32 %v361, %v51
      %v364 = vadd.f32 %v362, %v52
      %v365 = vmul.f32 %v359, %v359
      %v366 = vmul.f32 %v360, %v360
      %v367 = vsub.f32 %v55, %v365
      %v368 = vsub.f32 %v56, %v366
      %v369 = vmax.f32 %v367, 0.0
      %v370 = vmax.f32 %v368, 0.0
      %v371 = vadd.f32 %v353, %v355
      %v372 = vadd.f32 %v354, %v356
      %v373 = vrsqrt.pop %v369
      %v374 = vmul.f32 %v373, %v369
      %v375 = vmul.f32 %v374, %v373
      %v376 = vmul.f32 0.5, %v375
      %v377 = vsub.f32 1.5, %v376
      %v378 = vmul.f32 %v373, %v377
      %v379 = vmul.f32 %v369, %v378
      %vm380 = vcmp.eq.f32.partialorder %v369, inf
      %v381 = vsel %vm380, %v369, %v379
      %vm382 = vcmp.eq.f32.partialorder %v369, 0.0
      %v383 = vand.u32 %v369, 2147483648
      %v384 = vsel %vm382, %v383, %v381
      %v385 = vrsqrt.pop %v370
      %v386 = vmul.f32 %v385, %v370
      %v387 = vmul.f32 %v386, %v385
      %v388 = vmul.f32 0.5, %v387
      %v389 = vsub.f32 1.5, %v388
      %v390 = vmul.f32 %v385, %v389
      %v391 = vmul.f32 %v370, %v390
      %vm392 = vcmp.eq.f32.partialorder %v370, inf
      %v393 = vsel %vm392, %v370, %v391
      %vm394 = vcmp.eq.f32.partialorder %v370, 0.0
      %v395 = vand.u32 %v370, 2147483648
      %v396 = vsel %vm394, %v395, %v393
      %v397 = vadd.f32 %v371, %v384
      %v398 = vadd.f32 %v372, %v396
      %v399 = vmul.f32 %v397, 0.5
      %v400 = vmul.f32 %v398, 0.5
      %vm401 = vcmp.ge.f32.partialorder %v359, %v51
      %vm402 = vcmp.ge.f32.partialorder %v360, %v52
      %v403 = vsel %vm401, %v363, %v399
      %v404 = vsel %vm402, %v364, %v400
      %v405 = vmin.f32 %v327, %v403
      %v406 = vmin.f32 %v328, %v404
      %v407 = vrot.slane %v405, 7
      %v408 = vrot.slane %v406, 7
      %v409 = vsel %vm95, %v407, %v408
      %v410 = vsel %vm95, %v408, %v407
      %v411 = vsel %vm74, 1e+10, %v410
      %v412 = vsel %vm75, 1e+10, %v409
      %v413 = vrot.slane %v405, 1
      %v414 = vrot.slane %v406, 1
      %v415 = vsel %vm102, %v413, %v414
      %v416 = vsel %vm102, %v414, %v413
      %v417 = vsel %vm76, 1e+10, %v415
      %v418 = vsel %vm77, 1e+10, %v416
      %419 = vrot.lane.b32.xlu0 %v405, 1
      %v420 = vpop.permute.xlu0 %419
      %421 = vrot.lane.b32.xlu0 %v406, 1
      %v422 = vpop.permute.xlu0 %421
      %v423 = vsel %vm78, 1e+10, %v420
      %v424 = vsel %vm78, 1e+10, %v422
      %425 = vrot.lane.b32.xlu0 %v405, 127
      %v426 = vpop.permute.xlu0 %425
      %427 = vrot.lane.b32.xlu0 %v406, 127
      %v428 = vpop.permute.xlu0 %427
      %v429 = vsel %vm79, 1e+10, %v426
      %v430 = vsel %vm79, 1e+10, %v428
      %v431 = vmin.f32 %v411, %v417
      %v432 = vmin.f32 %v412, %v418
      %v433 = vmin.f32 %v423, %v429
      %v434 = vmin.f32 %v424, %v430
      %v435 = vsub.f32 %v431, %v433
      %v436 = vsub.f32 %v432, %v434
      %v437 = vand.u32 2147483647, %v435
      %v438 = vand.u32 2147483647, %v436
      %v439 = vmin.f32 %v431, %v433
      %v440 = vmin.f32 %v432, %v434
      %v441 = vadd.f32 %v439, %v51
      %v442 = vadd.f32 %v440, %v52
      %v443 = vmul.f32 %v437, %v437
      %v444 = vmul.f32 %v438, %v438
      %v445 = vsub.f32 %v55, %v443
      %v446 = vsub.f32 %v56, %v444
      %v447 = vmax.f32 %v445, 0.0
      %v448 = vmax.f32 %v446, 0.0
      %v449 = vadd.f32 %v431, %v433
      %v450 = vadd.f32 %v432, %v434
      %v451 = vrsqrt.pop %v447
      %v452 = vmul.f32 %v451, %v447
      %v453 = vmul.f32 %v452, %v451
      %v454 = vmul.f32 0.5, %v453
      %v455 = vsub.f32 1.5, %v454
      %v456 = vmul.f32 %v451, %v455
      %v457 = vmul.f32 %v447, %v456
      %vm458 = vcmp.eq.f32.partialorder %v447, inf
      %v459 = vsel %vm458, %v447, %v457
      %vm460 = vcmp.eq.f32.partialorder %v447, 0.0
      %v461 = vand.u32 %v447, 2147483648
      %v462 = vsel %vm460, %v461, %v459
      %v463 = vrsqrt.pop %v448
      %v464 = vmul.f32 %v463, %v448
      %v465 = vmul.f32 %v464, %v463
      %v466 = vmul.f32 0.5, %v465
      %v467 = vsub.f32 1.5, %v466
      %v468 = vmul.f32 %v463, %v467
      %v469 = vmul.f32 %v448, %v468
      %vm470 = vcmp.eq.f32.partialorder %v448, inf
      %v471 = vsel %vm470, %v448, %v469
      %vm472 = vcmp.eq.f32.partialorder %v448, 0.0
      %v473 = vand.u32 %v448, 2147483648
      %v474 = vsel %vm472, %v473, %v471
      %v475 = vadd.f32 %v449, %v462
      %v476 = vadd.f32 %v450, %v474
      %v477 = vmul.f32 %v475, 0.5
      %v478 = vmul.f32 %v476, 0.5
      %vm479 = vcmp.ge.f32.partialorder %v437, %v51
      %vm480 = vcmp.ge.f32.partialorder %v438, %v52
      %v481 = vsel %vm479, %v441, %v477
      %v482 = vsel %vm480, %v442, %v478
      %v483 = vmin.f32 %v405, %v481
      %v484 = vmin.f32 %v406, %v482
      %v485 = vrot.slane %v483, 7
      %v486 = vrot.slane %v484, 7
      %v487 = vsel %vm95, %v485, %v486
      %v488 = vsel %vm95, %v486, %v485
      %v489 = vsel %vm74, 1e+10, %v488
      %v490 = vsel %vm75, 1e+10, %v487
      %v491 = vrot.slane %v483, 1
      %v492 = vrot.slane %v484, 1
      %v493 = vsel %vm102, %v491, %v492
      %v494 = vsel %vm102, %v492, %v491
      %v495 = vsel %vm76, 1e+10, %v493
      %v496 = vsel %vm77, 1e+10, %v494
      %497 = vrot.lane.b32.xlu0 %v483, 1
      %v498 = vpop.permute.xlu0 %497
      %499 = vrot.lane.b32.xlu0 %v484, 1
      %v500 = vpop.permute.xlu0 %499
      %v501 = vsel %vm78, 1e+10, %v498
      %v502 = vsel %vm78, 1e+10, %v500
      %503 = vrot.lane.b32.xlu0 %v483, 127
      %v504 = vpop.permute.xlu0 %503
      %505 = vrot.lane.b32.xlu0 %v484, 127
      %v506 = vpop.permute.xlu0 %505
      %v507 = vsel %vm79, 1e+10, %v504
      %v508 = vsel %vm79, 1e+10, %v506
      %v509 = vmin.f32 %v489, %v495
      %v510 = vmin.f32 %v490, %v496
      %v511 = vmin.f32 %v501, %v507
      %v512 = vmin.f32 %v502, %v508
      %v513 = vsub.f32 %v509, %v511
      %v514 = vsub.f32 %v510, %v512
      %v515 = vand.u32 2147483647, %v513
      %v516 = vand.u32 2147483647, %v514
      %v517 = vmin.f32 %v509, %v511
      %v518 = vmin.f32 %v510, %v512
      %v519 = vadd.f32 %v517, %v51
      %v520 = vadd.f32 %v518, %v52
      %v521 = vmul.f32 %v515, %v515
      %v522 = vmul.f32 %v516, %v516
      %v523 = vsub.f32 %v55, %v521
      %v524 = vsub.f32 %v56, %v522
      %v525 = vmax.f32 %v523, 0.0
      %v526 = vmax.f32 %v524, 0.0
      %v527 = vadd.f32 %v509, %v511
      %v528 = vadd.f32 %v510, %v512
      %v529 = vrsqrt.pop %v525
      %v530 = vmul.f32 %v529, %v525
      %v531 = vmul.f32 %v530, %v529
      %v532 = vmul.f32 0.5, %v531
      %v533 = vsub.f32 1.5, %v532
      %v534 = vmul.f32 %v529, %v533
      %v535 = vmul.f32 %v525, %v534
      %vm536 = vcmp.eq.f32.partialorder %v525, inf
      %v537 = vsel %vm536, %v525, %v535
      %vm538 = vcmp.eq.f32.partialorder %v525, 0.0
      %v539 = vand.u32 %v525, 2147483648
      %v540 = vsel %vm538, %v539, %v537
      %v541 = vrsqrt.pop %v526
      %v542 = vmul.f32 %v541, %v526
      %v543 = vmul.f32 %v542, %v541
      %v544 = vmul.f32 0.5, %v543
      %v545 = vsub.f32 1.5, %v544
      %v546 = vmul.f32 %v541, %v545
      %v547 = vmul.f32 %v526, %v546
      %vm548 = vcmp.eq.f32.partialorder %v526, inf
      %v549 = vsel %vm548, %v526, %v547
      %vm550 = vcmp.eq.f32.partialorder %v526, 0.0
      %v551 = vand.u32 %v526, 2147483648
      %v552 = vsel %vm550, %v551, %v549
      %v553 = vadd.f32 %v527, %v540
      %v554 = vadd.f32 %v528, %v552
      %v555 = vmul.f32 %v553, 0.5
      %v556 = vmul.f32 %v554, 0.5
      %vm557 = vcmp.ge.f32.partialorder %v515, %v51
      %vm558 = vcmp.ge.f32.partialorder %v516, %v52
      %v559 = vsel %vm557, %v519, %v555
      %v560 = vsel %vm558, %v520, %v556
      %v561 = vmin.f32 %v483, %v559
      %v562 = vmin.f32 %v484, %v560
      %v563 = vrot.slane %v561, 7
      %v564 = vrot.slane %v562, 7
      %v565 = vsel %vm95, %v563, %v564
      %v566 = vsel %vm95, %v564, %v563
      %v567 = vsel %vm74, 1e+10, %v566
      %v568 = vsel %vm75, 1e+10, %v565
      %v569 = vrot.slane %v561, 1
      %v570 = vrot.slane %v562, 1
      %v571 = vsel %vm102, %v569, %v570
      %v572 = vsel %vm102, %v570, %v569
      %v573 = vsel %vm76, 1e+10, %v571
      %v574 = vsel %vm77, 1e+10, %v572
      %575 = vrot.lane.b32.xlu0 %v561, 1
      %v576 = vpop.permute.xlu0 %575
      %577 = vrot.lane.b32.xlu0 %v562, 1
      %v578 = vpop.permute.xlu0 %577
      %v579 = vsel %vm78, 1e+10, %v576
      %v580 = vsel %vm78, 1e+10, %v578
      %581 = vrot.lane.b32.xlu0 %v561, 127
      %v582 = vpop.permute.xlu0 %581
      %583 = vrot.lane.b32.xlu0 %v562, 127
      %v584 = vpop.permute.xlu0 %583
      %v585 = vsel %vm79, 1e+10, %v582
      %v586 = vsel %vm79, 1e+10, %v584
      %v587 = vmin.f32 %v567, %v573
      %v588 = vmin.f32 %v568, %v574
      %v589 = vmin.f32 %v579, %v585
      %v590 = vmin.f32 %v580, %v586
      %v591 = vsub.f32 %v587, %v589
      %v592 = vsub.f32 %v588, %v590
      %v593 = vand.u32 2147483647, %v591
      %v594 = vand.u32 2147483647, %v592
      %v595 = vmin.f32 %v587, %v589
      %v596 = vmin.f32 %v588, %v590
      %v597 = vadd.f32 %v595, %v51
      %v598 = vadd.f32 %v596, %v52
      %v599 = vmul.f32 %v593, %v593
      %v600 = vmul.f32 %v594, %v594
      %v601 = vsub.f32 %v55, %v599
      %v602 = vsub.f32 %v56, %v600
      %v603 = vmax.f32 %v601, 0.0
      %v604 = vmax.f32 %v602, 0.0
      %v605 = vadd.f32 %v587, %v589
      %v606 = vadd.f32 %v588, %v590
      %v607 = vrsqrt.pop %v603
      %v608 = vmul.f32 %v607, %v603
      %v609 = vmul.f32 %v608, %v607
      %v610 = vmul.f32 0.5, %v609
      %v611 = vsub.f32 1.5, %v610
      %v612 = vmul.f32 %v607, %v611
      %v613 = vmul.f32 %v603, %v612
      %vm614 = vcmp.eq.f32.partialorder %v603, inf
      %v615 = vsel %vm614, %v603, %v613
      %vm616 = vcmp.eq.f32.partialorder %v603, 0.0
      %v617 = vand.u32 %v603, 2147483648
      %v618 = vsel %vm616, %v617, %v615
      %v619 = vrsqrt.pop %v604
      %v620 = vmul.f32 %v619, %v604
      %v621 = vmul.f32 %v620, %v619
      %v622 = vmul.f32 0.5, %v621
      %v623 = vsub.f32 1.5, %v622
      %v624 = vmul.f32 %v619, %v623
      %v625 = vmul.f32 %v604, %v624
      %vm626 = vcmp.eq.f32.partialorder %v604, inf
      %v627 = vsel %vm626, %v604, %v625
      %vm628 = vcmp.eq.f32.partialorder %v604, 0.0
      %v629 = vand.u32 %v604, 2147483648
      %v630 = vsel %vm628, %v629, %v627
      %v631 = vadd.f32 %v605, %v618
      %v632 = vadd.f32 %v606, %v630
      %v633 = vmul.f32 %v631, 0.5
      %v634 = vmul.f32 %v632, 0.5
      %vm635 = vcmp.ge.f32.partialorder %v593, %v51
      %vm636 = vcmp.ge.f32.partialorder %v594, %v52
      %v637 = vsel %vm635, %v597, %v633
      %v638 = vsel %vm636, %v598, %v634
      %v639 = vmin.f32 %v561, %v637
      %v640 = vmin.f32 %v562, %v638
      %v641 = vrot.slane %v639, 7
      %v642 = vrot.slane %v640, 7
      %v643 = vsel %vm95, %v641, %v642
      %v644 = vsel %vm95, %v642, %v641
      %v645 = vsel %vm74, 1e+10, %v644
      %v646 = vsel %vm75, 1e+10, %v643
      %v647 = vrot.slane %v639, 1
      %v648 = vrot.slane %v640, 1
      %v649 = vsel %vm102, %v647, %v648
      %v650 = vsel %vm102, %v648, %v647
      %v651 = vsel %vm76, 1e+10, %v649
      %v652 = vsel %vm77, 1e+10, %v650
      %653 = vrot.lane.b32.xlu0 %v639, 1
      %v654 = vpop.permute.xlu0 %653
      %655 = vrot.lane.b32.xlu0 %v640, 1
      %v656 = vpop.permute.xlu0 %655
      %v657 = vsel %vm78, 1e+10, %v654
      %v658 = vsel %vm78, 1e+10, %v656
      %659 = vrot.lane.b32.xlu0 %v639, 127
      %v660 = vpop.permute.xlu0 %659
      %661 = vrot.lane.b32.xlu0 %v640, 127
      %v662 = vpop.permute.xlu0 %661
      %v663 = vsel %vm79, 1e+10, %v660
      %v664 = vsel %vm79, 1e+10, %v662
      %v665 = vmin.f32 %v645, %v651
      %v666 = vmin.f32 %v646, %v652
      %v667 = vmin.f32 %v657, %v663
      %v668 = vmin.f32 %v658, %v664
      %v669 = vsub.f32 %v665, %v667
      %v670 = vsub.f32 %v666, %v668
      %v671 = vand.u32 2147483647, %v669
      %v672 = vand.u32 2147483647, %v670
      %v673 = vmin.f32 %v665, %v667
      %v674 = vmin.f32 %v666, %v668
      %v675 = vadd.f32 %v673, %v51
      %v676 = vadd.f32 %v674, %v52
      %v677 = vmul.f32 %v671, %v671
      %v678 = vmul.f32 %v672, %v672
      %v679 = vsub.f32 %v55, %v677
      %v680 = vsub.f32 %v56, %v678
      %v681 = vmax.f32 %v679, 0.0
      %v682 = vmax.f32 %v680, 0.0
      %v683 = vadd.f32 %v665, %v667
      %v684 = vadd.f32 %v666, %v668
      %v685 = vrsqrt.pop %v681
      %v686 = vmul.f32 %v685, %v681
      %v687 = vmul.f32 %v686, %v685
      %v688 = vmul.f32 0.5, %v687
      %v689 = vsub.f32 1.5, %v688
      %v690 = vmul.f32 %v685, %v689
      %v691 = vmul.f32 %v681, %v690
      %vm692 = vcmp.eq.f32.partialorder %v681, inf
      %v693 = vsel %vm692, %v681, %v691
      %vm694 = vcmp.eq.f32.partialorder %v681, 0.0
      %v695 = vand.u32 %v681, 2147483648
      %v696 = vsel %vm694, %v695, %v693
      %v697 = vrsqrt.pop %v682
      %v698 = vmul.f32 %v697, %v682
      %v699 = vmul.f32 %v698, %v697
      %v700 = vmul.f32 0.5, %v699
      %v701 = vsub.f32 1.5, %v700
      %v702 = vmul.f32 %v697, %v701
      %v703 = vmul.f32 %v682, %v702
      %vm704 = vcmp.eq.f32.partialorder %v682, inf
      %v705 = vsel %vm704, %v682, %v703
      %vm706 = vcmp.eq.f32.partialorder %v682, 0.0
      %v707 = vand.u32 %v682, 2147483648
      %v708 = vsel %vm706, %v707, %v705
      %v709 = vadd.f32 %v683, %v696
      %v710 = vadd.f32 %v684, %v708
      %v711 = vmul.f32 %v709, 0.5
      %v712 = vmul.f32 %v710, 0.5
      %vm713 = vcmp.ge.f32.partialorder %v671, %v51
      %vm714 = vcmp.ge.f32.partialorder %v672, %v52
      %v715 = vsel %vm713, %v675, %v711
      %v716 = vsel %vm714, %v676, %v712
      %v717 = vmin.f32 %v639, %v715
      %v718 = vmin.f32 %v640, %v716
      %v719 = vsub.f32 %v84, %v717
      %v720 = vsub.f32 %v85, %v718
      %v721 = vsel %vm72, %v719, 0.0
      %v722 = vsel %vm73, %v720, 0.0
      %v723 = vmax.f32 %v721, %v722
      %724 = vmax.xlane.f32.xlu0 %v723
      %v725 = vpop.xlane.xlu0 %724
      %v726 = vrot.slane %v725, 4
      %v727 = vmax.f32 %v725, %v726
      %v728 = vrot.slane %v727, 2
      %v729 = vmax.f32 %v727, %v728
      %v730 = vrot.slane %v729, 1
      %v731 = vmax.f32 %v729, %v730
      %s732 = vtos %v731
      %s733 = sadd.s32 %s83, 1
    $region26: #{tpu_custom_call.1} parent=1 // loop_footer
      _
    $region27: #{tpu_custom_call.1} parent=1 // loop_footer_branch
      %82 = sbr.rel target = $region23
    $region28: #{tpu_custom_call.1} parent=1 // loop_exit
      _
    %v734 = vsel %vm67, 0.0, %v84
    %v735 = vsel %vm68, 0.0, %v85
    %736 = vst [vmem:[#allocation8] sm:$0xff] %v734
    %737 = vst [vmem:[#allocation8 + $0x8] sm:$0xff] %v735
    // Predicated region
    $region29: #{tpu_custom_call.1} parent=1 // pred_check
      _
    $region30: #{tpu_custom_call.1} parent=1 // pred_check_branch
      %739 = sbr.rel (0) target = $region32
    $region31: #{tpu_custom_call.1} parent=1 // pred_region
      %741 = vsyncadd [#allocation5], 0
      %s742 = sshll.u32 [#allocation8], 4
      %s743 = int_to_ptr.vmem [resolvable:$true] %s742
      %s744 = sshll.u32 %s3, 4
      %s745 = int_to_ptr.hbm [resolvable:$true] %s744
      %750 = dma.vmem_to_hbm [thread:$0]  %s743, 256, %s745, [#allocation5], 128, 128, 8
    $region32: #{tpu_custom_call.1} parent=1 // pred_fallthru
      _
    // Predicated region
    $region33: #{tpu_custom_call.1} parent=1 // pred_check
      _
    $region34: #{tpu_custom_call.1} parent=1 // pred_check_branch
      %752 = sbr.rel (0) target = $region36
    $region35: #{tpu_custom_call.1} parent=1 // pred_region
      %754 = dma.done [#allocation5], 256
    $region36: #{tpu_custom_call.1} parent=1 // pred_fallthru
      _
    %755 = vsyncpa [#allocation4], 1
    %756 = vsyncpa [#allocation5], 1
    %757 = vsyncpa [#allocation6], 1

</llo_original>
